<compile_context>
chip_gen: v7x
topology: tpu7x:2x2x1
jax: 0.10.0
libtpu: 0.0.40
codegen_flags: <defaults>
</compile_context>

<pallas_src>
import jax
import jax.numpy as jnp
from jax.experimental import pallas as pl
from jax.experimental.pallas import tpu as pltpu


def _round_up(x, m):
    return ((x + m - 1) // m) * m


def swiglu_ffn_kernel(x_ref, w1_ref, b1_ref, w2_ref, b2_ref, w3_ref, b3_ref,
                      o_ref, acc_ref):
    # x_ref: (tm, D); w1/w2: (D, th); b1/b2: (1, th); w3: (th, Dout);
    # b3: (1, Dout); o_ref: (tm, Dout); acc_ref: (tm, Dout) f32 accumulator.
    hj = pl.program_id(1)

    @pl.when(hj == 0)
    def _init():
        acc_ref[...] = jnp.zeros_like(acc_ref)

    x = x_ref[...]
    # Two narrow first-projection matmuls (f32 MXU accumulation) instead of
    # one (tm, 2H)-wide dot + slices.
    x1 = jnp.dot(x, w1_ref[...], preferred_element_type=jnp.float32)
    x1 = x1 + b1_ref[...].astype(jnp.float32)
    x2 = jnp.dot(x, w2_ref[...], preferred_element_type=jnp.float32)
    x2 = x2 + b2_ref[...].astype(jnp.float32)

    # SiLU(x1) * x2 (VPU + EUP), then stream-accumulate the second projection.
    hidden = x1 * jax.nn.sigmoid(x1) * x2
    acc_ref[...] += jnp.dot(hidden.astype(w3_ref.dtype), w3_ref[...],
                            preferred_element_type=jnp.float32)

    @pl.when(hj == pl.num_programs(1) - 1)
    def _finalize():
        o_ref[...] = (acc_ref[...] +
                      b3_ref[...].astype(jnp.float32)).astype(o_ref.dtype)


def swiglu_ffn(x, w12, b12, w3, b3, *, tile_m=256, tile_h=None):
    """x: (B, N, D) -> (B, N, Dout).  Fused SwiGLU FFN forward."""
    B, N, D = x.shape
    two_h = w12.shape[1]
    H = two_h // 2
    d_out = w3.shape[1]
    assert w12.shape == (D, two_h) and b12.shape == (two_h,)
    assert w3.shape == (H, d_out) and b3.shape == (d_out,)

    # Split the fused projection; chunk order matches PyTorch (x1 = first H).
    w1, w2 = w12[:, :H], w12[:, H:]
    b1, b2 = b12[:H].reshape(1, H), b12[H:].reshape(1, H)
    b3_2d = b3.reshape(1, d_out)

    # --- M tiling: big tiles to saturate the MXU; pad ragged token counts ---
    M = B * N
    tm = min(tile_m, _round_up(M, 8))
    assert tm % 8 == 0
    M_pad = _round_up(M, tm)
    x2d = x.reshape(M, D)
    if M_pad != M:
        x2d = jnp.pad(x2d, ((0, M_pad - M), (0, 0)))

    # --- H tiling: stream weights; keep tile lanes a multiple of 128 ---
    if tile_h is None:
        tile_h = 512 if (H > 1024 and H % 512 == 0) else H
    assert H % tile_h == 0 and (tile_h == H or tile_h % 128 == 0)
    n_h = H // tile_h
    grid = (M_pad // tm, n_h)

    # Advisory cost estimate (two matmuls + one sigmoid per hidden element).
    flops = 2 * M * D * two_h + 2 * M * H * d_out
    bytes_accessed = (
        M * D * jnp.dtype(x.dtype).itemsize
        + (w12.size + b12.size + w3.size + b3.size)
        * jnp.dtype(w12.dtype).itemsize
        + M * d_out * jnp.dtype(x.dtype).itemsize)
    cost = pl.CostEstimate(flops=flops, transcendentals=M * H,
                           bytes_accessed=bytes_accessed)

    # VMEM budget: double-buffered input/output blocks + the f32 accumulator.
    isz = jnp.dtype(x.dtype).itemsize
    wsz = jnp.dtype(w12.dtype).itemsize
    blk_bytes = (tm * D * isz                        # x tile
                 + 2 * (D * tile_h + tile_h) * wsz   # w1/b1 + w2/b2 tiles
                 + (tile_h * d_out + d_out) * wsz    # w3 tile + b3
                 + tm * d_out * isz)                 # out tile
    vmem_est = 2 * blk_bytes + tm * d_out * 4
    vmem_limit = int(min(max(int(vmem_est * 1.25), 32 * 2**20), 64 * 2**20))

    out2d = pl.pallas_call(
        swiglu_ffn_kernel,
        out_shape=jax.ShapeDtypeStruct((M_pad, d_out), x.dtype),
        grid_spec=pltpu.PrefetchScalarGridSpec(
            num_scalar_prefetch=0,
            grid=grid,
            in_specs=[
                pl.BlockSpec((tm, D), lambda i, j: (i, 0)),          # x tile
                pl.BlockSpec((D, tile_h), lambda i, j: (0, j)),      # w1
                pl.BlockSpec((1, tile_h), lambda i, j: (0, j)),      # b1
                pl.BlockSpec((D, tile_h), lambda i, j: (0, j)),      # w2
                pl.BlockSpec((1, tile_h), lambda i, j: (0, j)),      # b2
                pl.BlockSpec((tile_h, d_out), lambda i, j: (j, 0)),  # w3
                pl.BlockSpec((1, d_out), lambda i, j: (0, 0)),       # b3
            ],
            out_specs=pl.BlockSpec((tm, d_out), lambda i, j: (i, 0)),
            scratch_shapes=[pltpu.VMEM((tm, d_out), jnp.float32)],
        ),
        compiler_params=pltpu.CompilerParams(
            dimension_semantics=("parallel", "arbitrary"),
            vmem_limit_bytes=vmem_limit),
        cost_estimate=cost,
    )(x2d, w1, b1, w2, b2, w3, b3_2d)

    return out2d[:M].reshape(B, N, d_out)


def init_params(key, in_features, hidden_features, out_features,
                dtype=jnp.float32):
    """Deterministic synthetic init matching SwiGLUFFN parameter shapes."""
    k1, k2, k3, k4 = jax.random.split(key, 4)
    # PyTorch stores (out, in); we keep the transposed (in, out) layout.
    w12 = (jax.random.normal(k1, (in_features, 2 * hidden_features), dtype)
           * (1.0 / jnp.sqrt(in_features)))
    b12 = jax.random.normal(k2, (2 * hidden_features,), dtype) * 0.01
    w3 = (jax.random.normal(k3, (hidden_features, out_features), dtype)
          * (1.0 / jnp.sqrt(hidden_features)))
    b3 = jax.random.normal(k4, (out_features,), dtype) * 0.01
    return w12, b12, w3, b3


def swiglu_ffn_ref(x, w12, b12, w3, b3):
    """Pure-JAX reference mirroring the PyTorch forward."""
    x12 = jnp.einsum("bnd,dh->bnh", x, w12) + b12
    h = x12.shape[-1] // 2
    x1, x2 = x12[..., :h], x12[..., h:]
    hidden = jax.nn.silu(x1) * x2
    return jnp.einsum("bnh,ho->bno", hidden, w3) + b3


if __name__ == "__main__":
    B, N = 2, 8            # batch, sequence length
    in_features = 32
    hidden_features = 32
    out_features = 32

    key = jax.random.PRNGKey(0)
    kx, kp = jax.random.split(key)
    x = jax.random.normal(kx, (B, N, in_features), jnp.float32)
    w12, b12, w3, b3 = init_params(kp, in_features, hidden_features,
                                   out_features)
    ref = swiglu_ffn_ref(x, w12, b12, w3, b3)

    # f32 path (exact-ish).
    out = swiglu_ffn(x, w12, b12, w3, b3)
    out = jax.block_until_ready(out)
    assert out.shape == (B, N, out_features)
    assert jnp.allclose(out, ref, atol=1e-4, rtol=1e-4)

    # bf16 weights/activations path (f32 MXU accumulation inside the kernel).
    out_bf16 = swiglu_ffn(
        x.astype(jnp.bfloat16),
        w12.astype(jnp.bfloat16), b12.astype(jnp.bfloat16),
        w3.astype(jnp.bfloat16), b3.astype(jnp.bfloat16))
    out_bf16 = jax.block_until_ready(out_bf16)
    assert jnp.allclose(out_bf16.astype(jnp.float32), ref,
                        atol=8e-2, rtol=8e-2)

    print("KERNEL_OK")
</pallas_src>

<mosaic_0001>
module attributes {stable_mosaic.version = 11 : i64} {
  func.func @swiglu_ffn_kernel(%arg0: i32, %arg1: i32, %arg2: memref<16x32xf32, #tpu.memory_space<vmem>>, %arg3: memref<32x32xf32, #tpu.memory_space<vmem>>, %arg4: memref<1x32xf32, #tpu.memory_space<vmem>>, %arg5: memref<32x32xf32, #tpu.memory_space<vmem>>, %arg6: memref<1x32xf32, #tpu.memory_space<vmem>>, %arg7: memref<32x32xf32, #tpu.memory_space<vmem>>, %arg8: memref<1x32xf32, #tpu.memory_space<vmem>>, %arg9: memref<16x32xf32, #tpu.memory_space<vmem>>, %arg10: memref<16x32xf32, #tpu.memory_space<vmem>>) attributes {dimension_semantics = [#tpu.dimension_semantics<parallel>, #tpu.dimension_semantics<arbitrary>], iteration_bounds = array<i64: 1, 1>, scalar_prefetch = 0 : i64, scratch_operands = 1 : i64, tpu.core_type = #tpu.core_type<tc>, window_params = [{transform_indices = @transform_0, window_bounds = array<i64: 16, 32>}, {transform_indices = @transform_1, window_bounds = array<i64: 32, 32>}, {transform_indices = @transform_2, window_bounds = array<i64: 1, 32>}, {transform_indices = @transform_3, window_bounds = array<i64: 32, 32>}, {transform_indices = @transform_4, window_bounds = array<i64: 1, 32>}, {transform_indices = @transform_5, window_bounds = array<i64: 32, 32>}, {pipeline_mode = #tpu.pipeline_mode<synchronous>, transform_indices = @transform_6, window_bounds = array<i64: 1, 32>}, {transform_indices = @transform_7, window_bounds = array<i64: 16, 32>}]} {
    %c0_i32 = arith.constant 0 : i32
    %0 = arith.cmpi eq, %arg1, %c0_i32 : i32
    %1 = arith.extui %0 : i1 to i32
    %c0_i32_0 = arith.constant 0 : i32
    %2 = arith.cmpi ne, %1, %c0_i32_0 : i32
    scf.if %2 {
      %cst_21 = arith.constant 0.000000e+00 : f32
      %29 = vector.broadcast %cst_21 : f32 to vector<16x32xf32>
      %c0_22 = arith.constant 0 : index
      %c0_23 = arith.constant 0 : index
      %30 = vector.load %arg10[%c0_22, %c0_23] : memref<16x32xf32, #tpu.memory_space<vmem>>, vector<16x32xf32>
      tpu.vector_store %arg10[%c0_22, %c0_23], %29 {strides = array<i32>} : memref<16x32xf32, #tpu.memory_space<vmem>>, vector<16x32xf32>,
    } else {
    }
    %c0 = arith.constant 0 : index
    %c0_1 = arith.constant 0 : index
    %3 = vector.load %arg2[%c0, %c0_1] : memref<16x32xf32, #tpu.memory_space<vmem>>, vector<16x32xf32>
    %c0_2 = arith.constant 0 : index
    %c0_3 = arith.constant 0 : index
    %4 = vector.load %arg3[%c0_2, %c0_3] : memref<32x32xf32, #tpu.memory_space<vmem>>, vector<32x32xf32>
    %cst = arith.constant dense<0.000000e+00> : vector<16x32xf32>
    %5 = tpu.matmul %3, %4, %cst {dimension_numbers = #tpu.dot_dimension_numbers<[1], [0], [0], [1], [0, 0, 1, 1], [], []>} : vector<16x32xf32>, vector<32x32xf32>, vector<16x32xf32> -> vector<16x32xf32>
    %c0_4 = arith.constant 0 : index
    %c0_5 = arith.constant 0 : index
    %6 = vector.load %arg4[%c0_4, %c0_5] : memref<1x32xf32, #tpu.memory_space<vmem>>, vector<1x32xf32>
    %7 = vector.broadcast %6 : vector<1x32xf32> to vector<16x32xf32>
    %8 = arith.addf %5, %7 : vector<16x32xf32>
    %c0_6 = arith.constant 0 : index
    %c0_7 = arith.constant 0 : index
    %9 = vector.load %arg5[%c0_6, %c0_7] : memref<32x32xf32, #tpu.memory_space<vmem>>, vector<32x32xf32>
    %cst_8 = arith.constant dense<0.000000e+00> : vector<16x32xf32>
    %10 = tpu.matmul %3, %9, %cst_8 {dimension_numbers = #tpu.dot_dimension_numbers<[1], [0], [0], [1], [0, 0, 1, 1], [], []>} : vector<16x32xf32>, vector<32x32xf32>, vector<16x32xf32> -> vector<16x32xf32>
    %c0_9 = arith.constant 0 : index
    %c0_10 = arith.constant 0 : index
    %11 = vector.load %arg6[%c0_9, %c0_10] : memref<1x32xf32, #tpu.memory_space<vmem>>, vector<1x32xf32>
    %12 = vector.broadcast %11 : vector<1x32xf32> to vector<16x32xf32>
    %13 = arith.addf %10, %12 : vector<16x32xf32>
    %14 = arith.negf %8 : vector<16x32xf32>
    %15 = math.exp %14 : vector<16x32xf32>
    %cst_11 = arith.constant 1.000000e+00 : f32
    %16 = vector.broadcast %cst_11 : f32 to vector<16x32xf32>
    %17 = arith.addf %16, %15 : vector<16x32xf32>
    %18 = arith.divf %16, %17 : vector<16x32xf32>
    %19 = arith.mulf %8, %18 : vector<16x32xf32>
    %20 = arith.mulf %19, %13 : vector<16x32xf32>
    %c0_12 = arith.constant 0 : index
    %c0_13 = arith.constant 0 : index
    %21 = vector.load %arg10[%c0_12, %c0_13] : memref<16x32xf32, #tpu.memory_space<vmem>>, vector<16x32xf32>
    %c0_14 = arith.constant 0 : index
    %c0_15 = arith.constant 0 : index
    %22 = vector.load %arg7[%c0_14, %c0_15] : memref<32x32xf32, #tpu.memory_space<vmem>>, vector<32x32xf32>
    %cst_16 = arith.constant dense<0.000000e+00> : vector<16x32xf32>
    %23 = tpu.matmul %20, %22, %cst_16 {dimension_numbers = #tpu.dot_dimension_numbers<[1], [0], [0], [1], [0, 0, 1, 1], [], []>} : vector<16x32xf32>, vector<32x32xf32>, vector<16x32xf32> -> vector<16x32xf32>
    %24 = arith.addf %21, %23 : vector<16x32xf32>
    %c0_17 = arith.constant 0 : index
    %c0_18 = arith.constant 0 : index
    %25 = vector.load %arg10[%c0_17, %c0_18] : memref<16x32xf32, #tpu.memory_space<vmem>>, vector<16x32xf32>
    tpu.vector_store %arg10[%c0_17, %c0_18], %24 {strides = array<i32>} : memref<16x32xf32, #tpu.memory_space<vmem>>, vector<16x32xf32>,
    %c0_i32_19 = arith.constant 0 : i32
    %26 = arith.cmpi eq, %arg1, %c0_i32_19 : i32
    %27 = arith.extui %26 : i1 to i32
    %c0_i32_20 = arith.constant 0 : i32
    %28 = arith.cmpi ne, %27, %c0_i32_20 : i32
    scf.if %28 {
      %c0_21 = arith.constant 0 : index
      %c0_22 = arith.constant 0 : index
      %29 = vector.load %arg10[%c0_21, %c0_22] : memref<16x32xf32, #tpu.memory_space<vmem>>, vector<16x32xf32>
      %c0_23 = arith.constant 0 : index
      %c0_24 = arith.constant 0 : index
      %30 = vector.load %arg8[%c0_23, %c0_24] : memref<1x32xf32, #tpu.memory_space<vmem>>, vector<1x32xf32>
      %31 = vector.broadcast %30 : vector<1x32xf32> to vector<16x32xf32>
      %32 = arith.addf %29, %31 : vector<16x32xf32>
      %c0_25 = arith.constant 0 : index
      %c0_26 = arith.constant 0 : index
      %33 = vector.load %arg9[%c0_25, %c0_26] : memref<16x32xf32, #tpu.memory_space<vmem>>, vector<16x32xf32>
      tpu.vector_store %arg9[%c0_25, %c0_26], %32 {strides = array<i32>} : memref<16x32xf32, #tpu.memory_space<vmem>>, vector<16x32xf32>,
    } else {
    }
    return
  }
  func.func @transform_0(%arg0: i32, %arg1: i32) -> (i32, i32) {
    %c0_i32 = arith.constant 0 : i32
    %c0_i32_0 = arith.constant 0 : i32
    return %arg0, %c0_i32 : i32, i32
  }
  func.func @transform_1(%arg0: i32, %arg1: i32) -> (i32, i32) {
    %c0_i32 = arith.constant 0 : i32
    %c0_i32_0 = arith.constant 0 : i32
    return %c0_i32, %arg1 : i32, i32
  }
  func.func @transform_2(%arg0: i32, %arg1: i32) -> (i32, i32) {
    %c0_i32 = arith.constant 0 : i32
    %c0_i32_0 = arith.constant 0 : i32
    return %c0_i32, %arg1 : i32, i32
  }
  func.func @transform_3(%arg0: i32, %arg1: i32) -> (i32, i32) {
    %c0_i32 = arith.constant 0 : i32
    %c0_i32_0 = arith.constant 0 : i32
    return %c0_i32, %arg1 : i32, i32
  }
  func.func @transform_4(%arg0: i32, %arg1: i32) -> (i32, i32) {
    %c0_i32 = arith.constant 0 : i32
    %c0_i32_0 = arith.constant 0 : i32
    return %c0_i32, %arg1 : i32, i32
  }
  func.func @transform_5(%arg0: i32, %arg1: i32) -> (i32, i32) {
    %c0_i32 = arith.constant 0 : i32
    %c0_i32_0 = arith.constant 0 : i32
    return %arg1, %c0_i32 : i32, i32
  }
  func.func @transform_6(%arg0: i32, %arg1: i32) -> (i32, i32) {
    %c0_i32 = arith.constant 0 : i32
    %c0_i32_0 = arith.constant 0 : i32
    %c0_i32_1 = arith.constant 0 : i32
    return %c0_i32, %c0_i32_0 : i32, i32
  }
  func.func @transform_7(%arg0: i32, %arg1: i32) -> (i32, i32) {
    %c0_i32 = arith.constant 0 : i32
    %c0_i32_0 = arith.constant 0 : i32
    return %arg0, %c0_i32 : i32, i32
  }
}

</mosaic_0001>

<llo_original>
// kernel: tpu_custom_call.1
$region0: #{tpu_custom_call.1}
  #allocation0 [shape = 'u32[]', space=smem, size = 0x4, offset = 0x4, fixed_abs, tag = 'smem constant byte address 0x4 - core index']
  #allocation1 [shape = 'u32[144,128]{1,0:T(1,128)}', space=vmem, size = 0x12000, scoped, tag = 'internal scratch']
  #allocation2 [shape = 'f32[16,32]{1,0:T(8,128)}', space=vmem, size = 0x2000, scoped, tag = 'scratch operand']
  %s0 = inlined_call_operand.hbm [shape: f32[16,32], index: 0, kind: input, shape index: {}]
  %s1 = inlined_call_operand.hbm [shape: f32[32,32], index: 1, kind: input, shape index: {}]
  %s2 = inlined_call_operand.vmem [shape: f32[1,32], index: 2, kind: input, shape index: {}]
  %s3 = inlined_call_operand.hbm [shape: f32[32,32], index: 3, kind: input, shape index: {}]
  %s4 = inlined_call_operand.vmem [shape: f32[1,32], index: 4, kind: input, shape index: {}]
  %s5 = inlined_call_operand.hbm [shape: f32[32,32], index: 5, kind: input, shape index: {}]
  %s6 = inlined_call_operand.vmem [shape: f32[1,32], index: 6, kind: input, shape index: {}]
  %s7 = inlined_call_operand.hbm [shape: f32[16,32], index: 7, kind: output, shape index: {}]
  %s8 = sld [smem:[#allocation0]]
  $region62: #{tpu_custom_call.1} parent=0
    _
  %s10 = ssub.s32 1, %s8
  %s11 = scalar_select 0, %s10, %s8
  $region1: #{tpu_custom_call.1} parent=0
    #allocation3 [shape = 'u8[8192]{0}', space=vmem, size = 0x2000, scoped, tag = 'input window, operand 0, single buffered']
    #allocation4 [shape = 's32[1]{0}', space=sflag, size = 0x4, scoped, tag = 'scoped memory for tpu_custom_call.1']
    #allocation5 [shape = 's32[1]{0}', space=sflag, size = 0x4, scoped, tag = 'scoped memory for tpu_custom_call.1']
    #allocation6 [shape = 'u8[16384]{0}', space=vmem, size = 0x4000, scoped, tag = 'input window, operand 1, single buffered']
    #allocation7 [shape = 's32[1]{0}', space=sflag, size = 0x4, scoped, tag = 'scoped memory for tpu_custom_call.1']
    #allocation8 [shape = 'u8[16384]{0}', space=vmem, size = 0x4000, scoped, tag = 'input window, operand 3, single buffered']
    #allocation9 [shape = 'u8[16384]{0}', space=vmem, size = 0x4000, scoped, tag = 'input window, operand 5, single buffered']
    #allocation10 [shape = 's32[1]{0}', space=sflag, size = 0x4, scoped, tag = 'scoped memory for tpu_custom_call.1']
    #allocation11 [shape = 'u8[8192]{0}', space=vmem, size = 0x2000, scoped, tag = 'output window, operand 0, single buffered']
    %12 = vsyncpa [#allocation4], 0
    %13 = vsyncpa [#allocation7], 0
    %14 = vsyncpa [#allocation10], 0
    %15 = vsyncpa [#allocation5], 0
    // Predicated region
    $region2: #{tpu_custom_call.1} parent=1 // pred_check
      _
    $region3: #{tpu_custom_call.1} parent=1 // pred_check_branch
      %17 = sbr.rel (0) target = $region5
    $region4: #{tpu_custom_call.1} parent=1 // pred_region
      %s19 = ssub.s32 256, 256
      %20 = vsyncadd [#allocation4], %s19
      %s21 = sshll.u32 [#allocation3], 4
      %s22 = int_to_ptr.vmem [resolvable:$true] %s21
      %27 = dma.hbm_to_vmem [thread:$0]  %s0, 256, %s22, [#allocation4], 128, 128, 8
    $region5: #{tpu_custom_call.1} parent=1 // pred_fallthru
      _
    // Predicated region
    $region6: #{tpu_custom_call.1} parent=1 // pred_check
      _
    $region7: #{tpu_custom_call.1} parent=1 // pred_check_branch
      %29 = sbr.rel (0) target = $region9
    $region8: #{tpu_custom_call.1} parent=1 // pred_region
      %s31 = ssub.s32 512, 512
      %32 = vsyncadd [#allocation7], %s31
      %s33 = sshll.u32 [#allocation6], 4
      %s34 = int_to_ptr.vmem [resolvable:$true] %s33
      %39 = dma.hbm_to_vmem [thread:$0]  %s1, 512, %s34, [#allocation7], 128, 128, 8
    $region9: #{tpu_custom_call.1} parent=1 // pred_fallthru
      _
    // Predicated region
    $region10: #{tpu_custom_call.1} parent=1 // pred_check
      _
    $region11: #{tpu_custom_call.1} parent=1 // pred_check_branch
      %41 = sbr.rel (0) target = $region13
    $region12: #{tpu_custom_call.1} parent=1 // pred_region
      _
    $region13: #{tpu_custom_call.1} parent=1 // pred_fallthru
      _
    // Predicated region
    $region14: #{tpu_custom_call.1} parent=1 // pred_check
      _
    $region15: #{tpu_custom_call.1} parent=1 // pred_check_branch
      %43 = sbr.rel (0) target = $region17
    $region16: #{tpu_custom_call.1} parent=1 // pred_region
      %s45 = ssub.s32 512, 512
      %46 = vsyncadd [#allocation7], %s45
      %s47 = sshll.u32 [#allocation8], 4
      %s48 = int_to_ptr.vmem [resolvable:$true] %s47
      %53 = dma.hbm_to_vmem [thread:$0]  %s3, 512, %s48, [#allocation7], 128, 128, 8
    $region17: #{tpu_custom_call.1} parent=1 // pred_fallthru
      _
    // Predicated region
    $region18: #{tpu_custom_call.1} parent=1 // pred_check
      _
    $region19: #{tpu_custom_call.1} parent=1 // pred_check_branch
      %55 = sbr.rel (0) target = $region21
    $region20: #{tpu_custom_call.1} parent=1 // pred_region
      _
    $region21: #{tpu_custom_call.1} parent=1 // pred_fallthru
      _
    // Predicated region
    $region22: #{tpu_custom_call.1} parent=1 // pred_check
      _
    $region23: #{tpu_custom_call.1} parent=1 // pred_check_branch
      %57 = sbr.rel (0) target = $region25
    $region24: #{tpu_custom_call.1} parent=1 // pred_region
      %s59 = ssub.s32 512, 512
      %60 = vsyncadd [#allocation10], %s59
      %s61 = sshll.u32 [#allocation9], 4
      %s62 = int_to_ptr.vmem [resolvable:$true] %s61
      %67 = dma.hbm_to_vmem [thread:$0]  %s5, 512, %s62, [#allocation10], 128, 128, 8
    $region25: #{tpu_custom_call.1} parent=1 // pred_fallthru
      _
    // Predicated region
    $region26: #{tpu_custom_call.1} parent=1 // pred_check
      _
    $region27: #{tpu_custom_call.1} parent=1 // pred_check_branch
      %69 = sbr.rel (0) target = $region29
    $region28: #{tpu_custom_call.1} parent=1 // pred_region
      _
    $region29: #{tpu_custom_call.1} parent=1 // pred_fallthru
      _
    // Predicated region
    $region30: #{tpu_custom_call.1} parent=1 // pred_check
      _
    $region31: #{tpu_custom_call.1} parent=1 // pred_check_branch
      %71 = sbr.rel (0) target = $region33
    $region32: #{tpu_custom_call.1} parent=1 // pred_region
      %72 = dma.done [#allocation4], 256
    $region33: #{tpu_custom_call.1} parent=1 // pred_fallthru
      _
    // Predicated region
    $region34: #{tpu_custom_call.1} parent=1 // pred_check
      _
    $region35: #{tpu_custom_call.1} parent=1 // pred_check_branch
      %74 = sbr.rel (0) target = $region37
    $region36: #{tpu_custom_call.1} parent=1 // pred_region
      %75 = dma.done [#allocation7], 512
    $region37: #{tpu_custom_call.1} parent=1 // pred_fallthru
      _
    // Predicated region
    $region38: #{tpu_custom_call.1} parent=1 // pred_check
      _
    $region39: #{tpu_custom_call.1} parent=1 // pred_check_branch
      %77 = sbr.rel (0) target = $region41
    $region40: #{tpu_custom_call.1} parent=1 // pred_region
      %78 = dma.done [#allocation7], 512
    $region41: #{tpu_custom_call.1} parent=1 // pred_fallthru
      _
    // Predicated region
    $region42: #{tpu_custom_call.1} parent=1 // pred_check
      _
    $region43: #{tpu_custom_call.1} parent=1 // pred_check_branch
      %80 = sbr.rel (0) target = $region45
    $region44: #{tpu_custom_call.1} parent=1 // pred_region
      %81 = dma.done [#allocation10], 512
    $region45: #{tpu_custom_call.1} parent=1 // pred_fallthru
      _
    %p82 = scmp.eq.s32.totalorder 0, 0
    // Predicated region
    $region46: #{tpu_custom_call.1} parent=1 // pred_check
      %p83 = pneg %p82
    $region47: #{tpu_custom_call.1} parent=1 // pred_check_branch
      %85 = sbr.rel (%p83) target = $region49
    $region48: #{tpu_custom_call.1} parent=1 // pred_region
      %vm86 = vcmask 261120
      %87 = vst.msk [vmem:[#allocation2] sm:$0xff] %vm86, 0.0
      %88 = vst.msk [vmem:[#allocation2 + $0x8] sm:$0xff] %vm86, 0.0
    $region49: #{tpu_custom_call.1} parent=1 // pred_fallthru
      _
    %v89 = vld [vmem:[#allocation3] sm:$0xff]
    %v90 = vld [vmem:[#allocation3 + $0x8] sm:$0xff]
    %v91 = vld [vmem:[#allocation6] sm:$0xff]
    %v92 = vld [vmem:[#allocation6 + $0x8] sm:$0xff]
    %v93 = vld [vmem:[#allocation6 + $0x10] sm:$0xff]
    %v94 = vld [vmem:[#allocation6 + $0x18] sm:$0xff]
    %v95 = vld [vmem:[%s2] sm:$0x1]
    %v97 = vlaneseq
    %v98 = vshrl.u32 %v97, 7
    %v99 = vsub.s32 0, %v98
    %v100 = vrot.slane %v95, %v99
    %vm102 = vcmask 261120
    %v104 = vsel %vm102, %v89, 0
    %v107 = vsel %vm102, %v90, 0
    %109 = vmatprep.subr.mxu0 0.0
    %110 = vmatpush1.msra.mxu0 %v91
    %111 = vmatprep.subr.mxu0 0.0
    %112 = vmatpush1.msra.mxu0 %v92
    %113 = vmatprep.subr.mxu0 0.0
    %114 = vmatpush1.msra.mxu0 %v93
    %115 = vmatprep.subr.mxu0 0.0
    %116 = vmatpush1.msra.mxu0 %v94
    %117 = vmatprep.subr.mxu0 0.0
    %118 = vmatpush1.msra.mxu0 0.0
    %119 = vmatprep.subr.mxu0 0.0
    %120 = vmatpush1.msra.mxu0 0.0
    %121 = vmatprep.subr.mxu0 0.0
    %122 = vmatpush1.msra.mxu0 0.0
    %123 = vmatprep.subr.mxu0 0.0
    %124 = vmatpush1.msra.mxu0 0.0
    %125 = vmatprep.subr.mxu0 0.0
    %126 = vmatpush1.msra.mxu0 0.0
    %127 = vmatprep.subr.mxu0 0.0
    %128 = vmatpush1.msra.mxu0 0.0
    %129 = vmatprep.subr.mxu0 0.0
    %130 = vmatpush1.msra.mxu0 0.0
    %131 = vmatprep.subr.mxu0 0.0
    %132 = vmatpush1.msra.mxu0 0.0
    %133 = vmatprep.subr.mxu0 0.0
    %134 = vmatpush1.msra.mxu0 0.0
    %135 = vmatprep.subr.mxu0 0.0
    %136 = vmatpush1.msra.mxu0 0.0
    %137 = vmatprep.subr.mxu0 0.0
    %138 = vmatpush1.msra.mxu0 0.0
    %139 = vmatprep.subr.mxu0 0.0
    %140 = vmatpush1.msra.mxu0 0.0
    %141 = vmatprep.subr.mxu0 0.0
    %142 = vmatpush1.msra.mxu0 0.0
    %143 = vmatprep.subr.mxu0 0.0
    %144 = vmatpush1.msra.mxu0 0.0
    %145 = vmatprep.subr.mxu0 0.0
    %146 = vmatpush1.msra.mxu0 0.0
    %147 = vmatprep.subr.mxu0 0.0
    %148 = vmatpush1.msra.mxu0 0.0
    %149 = vmatprep.subr.mxu0 0.0
    %150 = vmatpush1.msra.mxu0 0.0
    %151 = vmatprep.subr.mxu0 0.0
    %152 = vmatpush1.msra.mxu0 0.0
    %153 = vmatprep.subr.mxu0 0.0
    %154 = vmatpush1.msra.mxu0 0.0
    %155 = vmatprep.subr.mxu0 0.0
    %156 = vmatpush1.msra.mxu0 0.0
    %157 = vmatprep.subr.mxu0 0.0
    %158 = vmatpush1.msra.mxu0 0.0
    %159 = vmatprep.subr.mxu0 0.0
    %160 = vmatpush1.msra.mxu0 0.0
    %161 = vmatprep.subr.mxu0 0.0
    %162 = vmatpush1.msra.mxu0 0.0
    %163 = vmatprep.subr.mxu0 0.0
    %164 = vmatpush1.msra.mxu0 0.0
    %165 = vmatprep.subr.mxu0 0.0
    %166 = vmatpush1.msra.mxu0 0.0
    %167 = vmatprep.subr.mxu0 0.0
    %168 = vmatpush1.msra.mxu0 0.0
    %169 = vmatprep.subr.mxu0 0.0
    %170 = vmatpush1.msra.mxu0 0.0
    %171 = vmatprep.subr.mxu0 0.0
    %172 = vmatpush1.msra.mxu0 0.0
    %173 = vmatprep.mubr.f32.mxu0 0.0
    %174 = vmatmul.mubr.f32.gmra.mrb[0].mxu0 %v104
    %v175 = vpop.f32.mrb[0].mxu0
    %v176 = vadd.f32 %v100, %v175
    %v177 = vpop.f32.mrb[0].mxu0
    %178 = vmatprep.mubr.f32.mxu0 0.0
    %179 = vmatmul.mubr.f32.gmra.mrb[0].mxu0 %v107
    %v180 = vpop.f32.mrb[0].mxu0
    %v181 = vadd.f32 %v100, %v180
    %v182 = vpop.f32.mrb[0].mxu0
    %183 = vdwg.mxu0
    %v184 = vld [vmem:[#allocation8] sm:$0xff]
    %v185 = vld [vmem:[#allocation8 + $0x8] sm:$0xff]
    %v186 = vld [vmem:[#allocation8 + $0x10] sm:$0xff]
    %v187 = vld [vmem:[#allocation8 + $0x18] sm:$0xff]
    %v188 = vld [vmem:[%s4] sm:$0x1]
    %v190 = vlaneseq
    %v191 = vshrl.u32 %v190, 7
    %v192 = vsub.s32 0, %v191
    %v193 = vrot.slane %v188, %v192
    %195 = vmatprep.subr.mxu0 0.0
    %196 = vmatpush1.msra.mxu0 %v184
    %197 = vmatprep.subr.mxu0 0.0
    %198 = vmatpush1.msra.mxu0 %v185
    %199 = vmatprep.subr.mxu0 0.0
    %200 = vmatpush1.msra.mxu0 %v186
    %201 = vmatprep.subr.mxu0 0.0
    %202 = vmatpush1.msra.mxu0 %v187
    %203 = vmatprep.subr.mxu0 0.0
    %204 = vmatpush1.msra.mxu0 0.0
    %205 = vmatprep.subr.mxu0 0.0
    %206 = vmatpush1.msra.mxu0 0.0
    %207 = vmatprep.subr.mxu0 0.0
    %208 = vmatpush1.msra.mxu0 0.0
    %209 = vmatprep.subr.mxu0 0.0
    %210 = vmatpush1.msra.mxu0 0.0
    %211 = vmatprep.subr.mxu0 0.0
    %212 = vmatpush1.msra.mxu0 0.0
    %213 = vmatprep.subr.mxu0 0.0
    %214 = vmatpush1.msra.mxu0 0.0
    %215 = vmatprep.subr.mxu0 0.0
    %216 = vmatpush1.msra.mxu0 0.0
    %217 = vmatprep.subr.mxu0 0.0
    %218 = vmatpush1.msra.mxu0 0.0
    %219 = vmatprep.subr.mxu0 0.0
    %220 = vmatpush1.msra.mxu0 0.0
    %221 = vmatprep.subr.mxu0 0.0
    %222 = vmatpush1.msra.mxu0 0.0
    %223 = vmatprep.subr.mxu0 0.0
    %224 = vmatpush1.msra.mxu0 0.0
    %225 = vmatprep.subr.mxu0 0.0
    %226 = vmatpush1.msra.mxu0 0.0
    %227 = vmatprep.subr.mxu0 0.0
    %228 = vmatpush1.msra.mxu0 0.0
    %229 = vmatprep.subr.mxu0 0.0
    %230 = vmatpush1.msra.mxu0 0.0
    %231 = vmatprep.subr.mxu0 0.0
    %232 = vmatpush1.msra.mxu0 0.0
    %233 = vmatprep.subr.mxu0 0.0
    %234 = vmatpush1.msra.mxu0 0.0
    %235 = vmatprep.subr.mxu0 0.0
    %236 = vmatpush1.msra.mxu0 0.0
    %237 = vmatprep.subr.mxu0 0.0
    %238 = vmatpush1.msra.mxu0 0.0
    %239 = vmatprep.subr.mxu0 0.0
    %240 = vmatpush1.msra.mxu0 0.0
    %241 = vmatprep.subr.mxu0 0.0
    %242 = vmatpush1.msra.mxu0 0.0
    %243 = vmatprep.subr.mxu0 0.0
    %244 = vmatpush1.msra.mxu0 0.0
    %245 = vmatprep.subr.mxu0 0.0
    %246 = vmatpush1.msra.mxu0 0.0
    %247 = vmatprep.subr.mxu0 0.0
    %248 = vmatpush1.msra.mxu0 0.0
    %249 = vmatprep.subr.mxu0 0.0
    %250 = vmatpush1.msra.mxu0 0.0
    %251 = vmatprep.subr.mxu0 0.0
    %252 = vmatpush1.msra.mxu0 0.0
    %253 = vmatprep.subr.mxu0 0.0
    %254 = vmatpush1.msra.mxu0 0.0
    %255 = vmatprep.subr.mxu0 0.0
    %256 = vmatpush1.msra.mxu0 0.0
    %257 = vmatprep.subr.mxu0 0.0
    %258 = vmatpush1.msra.mxu0 0.0
    %259 = vmatprep.mubr.f32.mxu0 0.0
    %260 = vmatmul.mubr.f32.gmra.mrb[0].mxu0 %v104
    %v261 = vpop.f32.mrb[0].mxu0
    %v262 = vadd.f32 %v193, %v261
    %v263 = vpop.f32.mrb[0].mxu0
    %264 = vmatprep.mubr.f32.mxu0 0.0
    %265 = vmatmul.mubr.f32.gmra.mrb[0].mxu0 %v107
    %v266 = vpop.f32.mrb[0].mxu0
    %v267 = vadd.f32 %v193, %v266
    %v268 = vpop.f32.mrb[0].mxu0
    %269 = vdwg.mxu0
    %v270 = vxor.u32 %v176, 2147483648
    %v271 = vxor.u32 %v181, 2147483648
    %v272 = vmul.f32 %v270, 1.442695
    %v273 = vpow.pop %v272
    %v274 = vmul.f32 %v271, 1.442695
    %v275 = vpow.pop %v274
    %v276 = vadd.f32 %v273, 1.0
    %v277 = vadd.f32 %v275, 1.0
    %v278 = vrcp.pop %v276
    %v279 = vmul.f32 1.0, %v278
    %v280 = vrcp.pop %v277
    %v281 = vmul.f32 1.0, %v280
    %v282 = vmul.f32 %v176, %v279
    %v283 = vmul.f32 %v181, %v281
    %v284 = vmul.f32 %v282, %v262
    %v285 = vmul.f32 %v283, %v267
    %v286 = vld [vmem:[#allocation2] sm:$0xff]
    %v287 = vld [vmem:[#allocation2 + $0x8] sm:$0xff]
    %v288 = vld [vmem:[#allocation9] sm:$0xff]
    %v289 = vld [vmem:[#allocation9 + $0x8] sm:$0xff]
    %v290 = vld [vmem:[#allocation9 + $0x10] sm:$0xff]
    %v291 = vld [vmem:[#allocation9 + $0x18] sm:$0xff]
    %v293 = vsel %vm102, %v284, 0
    %v296 = vsel %vm102, %v285, 0
    %298 = vmatprep.subr.mxu0 0.0
    %299 = vmatpush1.msra.mxu0 %v288
    %300 = vmatprep.subr.mxu0 0.0
    %301 = vmatpush1.msra.mxu0 %v289
    %302 = vmatprep.subr.mxu0 0.0
    %303 = vmatpush1.msra.mxu0 %v290
    %304 = vmatprep.subr.mxu0 0.0
    %305 = vmatpush1.msra.mxu0 %v291
    %306 = vmatprep.subr.mxu0 0.0
    %307 = vmatpush1.msra.mxu0 0.0
    %308 = vmatprep.subr.mxu0 0.0
    %309 = vmatpush1.msra.mxu0 0.0
    %310 = vmatprep.subr.mxu0 0.0
    %311 = vmatpush1.msra.mxu0 0.0
    %312 = vmatprep.subr.mxu0 0.0
    %313 = vmatpush1.msra.mxu0 0.0
    %314 = vmatprep.subr.mxu0 0.0
    %315 = vmatpush1.msra.mxu0 0.0
    %316 = vmatprep.subr.mxu0 0.0
    %317 = vmatpush1.msra.mxu0 0.0
    %318 = vmatprep.subr.mxu0 0.0
    %319 = vmatpush1.msra.mxu0 0.0
    %320 = vmatprep.subr.mxu0 0.0
    %321 = vmatpush1.msra.mxu0 0.0
    %322 = vmatprep.subr.mxu0 0.0
    %323 = vmatpush1.msra.mxu0 0.0
    %324 = vmatprep.subr.mxu0 0.0
    %325 = vmatpush1.msra.mxu0 0.0
    %326 = vmatprep.subr.mxu0 0.0
    %327 = vmatpush1.msra.mxu0 0.0
    %328 = vmatprep.subr.mxu0 0.0
    %329 = vmatpush1.msra.mxu0 0.0
    %330 = vmatprep.subr.mxu0 0.0
    %331 = vmatpush1.msra.mxu0 0.0
    %332 = vmatprep.subr.mxu0 0.0
    %333 = vmatpush1.msra.mxu0 0.0
    %334 = vmatprep.subr.mxu0 0.0
    %335 = vmatpush1.msra.mxu0 0.0
    %336 = vmatprep.subr.mxu0 0.0
    %337 = vmatpush1.msra.mxu0 0.0
    %338 = vmatprep.subr.mxu0 0.0
    %339 = vmatpush1.msra.mxu0 0.0
    %340 = vmatprep.subr.mxu0 0.0
    %341 = vmatpush1.msra.mxu0 0.0
    %342 = vmatprep.subr.mxu0 0.0
    %343 = vmatpush1.msra.mxu0 0.0
    %344 = vmatprep.subr.mxu0 0.0
    %345 = vmatpush1.msra.mxu0 0.0
    %346 = vmatprep.subr.mxu0 0.0
    %347 = vmatpush1.msra.mxu0 0.0
    %348 = vmatprep.subr.mxu0 0.0
    %349 = vmatpush1.msra.mxu0 0.0
    %350 = vmatprep.subr.mxu0 0.0
    %351 = vmatpush1.msra.mxu0 0.0
    %352 = vmatprep.subr.mxu0 0.0
    %353 = vmatpush1.msra.mxu0 0.0
    %354 = vmatprep.subr.mxu0 0.0
    %355 = vmatpush1.msra.mxu0 0.0
    %356 = vmatprep.subr.mxu0 0.0
    %357 = vmatpush1.msra.mxu0 0.0
    %358 = vmatprep.subr.mxu0 0.0
    %359 = vmatpush1.msra.mxu0 0.0
    %360 = vmatprep.subr.mxu0 0.0
    %361 = vmatpush1.msra.mxu0 0.0
    %362 = vmatprep.mubr.f32.mxu0 0.0
    %363 = vmatmul.mubr.f32.gmra.mrb[0].mxu0 %v293
    %v364 = vpop.f32.mrb[0].mxu0
    %v365 = vadd.f32 0.0, %v364
    %v366 = vpop.f32.mrb[0].mxu0
    %367 = vmatprep.mubr.f32.mxu0 0.0
    %368 = vmatmul.mubr.f32.gmra.mrb[0].mxu0 %v296
    %v369 = vpop.f32.mrb[0].mxu0
    %v370 = vadd.f32 0.0, %v369
    %v371 = vpop.f32.mrb[0].mxu0
    %372 = vdwg.mxu0
    %v373 = vadd.f32 %v286, %v365
    %v374 = vadd.f32 %v287, %v370
    %375 = vst.msk [vmem:[#allocation2] sm:$0xff] %vm102, %v373
    %376 = vst.msk [vmem:[#allocation2 + $0x8] sm:$0xff] %vm102, %v374
    // Predicated region
    $region50: #{tpu_custom_call.1} parent=1 // pred_check
      %p377 = pneg %p82
    $region51: #{tpu_custom_call.1} parent=1 // pred_check_branch
      %379 = sbr.rel (%p377) target = $region53
    $region52: #{tpu_custom_call.1} parent=1 // pred_region
      %v380 = vld [vmem:[#allocation2] sm:$0xff]
      %v381 = vld [vmem:[#allocation2 + $0x8] sm:$0xff]
      %v382 = vld [vmem:[%s6] sm:$0x1]
      %v384 = vlaneseq
      %v385 = vshrl.u32 %v384, 7
      %v386 = vsub.s32 0, %v385
      %v387 = vrot.slane %v382, %v386
      %v389 = vadd.f32 %v380, %v387
      %v390 = vadd.f32 %v381, %v387
      %391 = vst.msk [vmem:[#allocation11] sm:$0xff] %vm102, %v389
      %392 = vst.msk [vmem:[#allocation11 + $0x8] sm:$0xff] %vm102, %v390
    $region53: #{tpu_custom_call.1} parent=1 // pred_fallthru
      _
    // Predicated region
    $region54: #{tpu_custom_call.1} parent=1 // pred_check
      _
    $region55: #{tpu_custom_call.1} parent=1 // pred_check_branch
      %394 = sbr.rel (0) target = $region57
    $region56: #{tpu_custom_call.1} parent=1 // pred_region
      %s396 = ssub.s32 256, 256
      %397 = vsyncadd [#allocation5], %s396
      %s398 = sshll.u32 [#allocation11], 4
      %s399 = int_to_ptr.vmem [resolvable:$true] %s398
      %404 = dma.vmem_to_hbm [thread:$0]  %s399, 256, %s7, [#allocation5], 128, 128, 8
    $region57: #{tpu_custom_call.1} parent=1 // pred_fallthru
      _
    // Predicated region
    $region58: #{tpu_custom_call.1} parent=1 // pred_check
      _
    $region59: #{tpu_custom_call.1} parent=1 // pred_check_branch
      %406 = sbr.rel (0) target = $region61
    $region60: #{tpu_custom_call.1} parent=1 // pred_region
      %407 = dma.done [#allocation5], 256
    $region61: #{tpu_custom_call.1} parent=1 // pred_fallthru
      _
    %408 = vsyncpa [#allocation4], 1
    %409 = vsyncpa [#allocation7], 1
    %410 = vsyncpa [#allocation10], 1
    %411 = vsyncpa [#allocation5], 1

</llo_original>
